<compile_context>
chip_gen: v6e
topology: v6e:2x2x1
jax: 0.10.0
libtpu: 0.0.40
codegen_flags: <defaults>
</compile_context>

<pallas_src>
import jax
import jax.numpy as jnp
from jax.experimental import pallas as pl
from jax.experimental.pallas import tpu as pltpu


def _contact_head_kernel(x_row_ref, x_col_ref, wp_ref, b_ref, o_ref, lhs_ref):
    # x_row_ref : (1, TLi, H) VMEM  -- rows i of this output tile
    # x_col_ref : (1, TLj, H) VMEM  -- cols j of this output tile
    # wp_ref    : (2, H)      VMEM  -- "prod" half of the linear weight
    # b_ref     : (2,)        SMEM  -- bias
    # o_ref     : (1, 2, TLi, TLj) VMEM -- symmetrized logits, channels-first
    # lhs_ref   : (2, TLi, H) VMEM scratch -- x_row ⊙ Wp_k, cached across j

    # The row block is resident across all j steps (its block index does not
    # depend on j), so only scale it by the weights once per (i, batch).
    @pl.when(pl.program_id(2) == 0)
    def _():
        x_row = x_row_ref[0]                       # (TLi, H)
        lhs_ref[0] = x_row * wp_ref[0:1, :]
        lhs_ref[1] = x_row * wp_ref[1:2, :]

    x_col = x_col_ref[0]                           # (TLj, H)
    for c in range(2):                             # static unroll, 2 channels
        # Contract on H of both operands (A · Bᵀ form, no XLU transpose).
        res = jax.lax.dot_general(
            lhs_ref[c], x_col,
            dimension_numbers=(((1,), (1,)), ((), ())),
            preferred_element_type=jnp.float32)    # (TLi, TLj) f32
        o_ref[0, c, :, :] = (res + b_ref[c]).astype(o_ref.dtype)


def _pick_tiles(L, target=512):
    """Output-tile sizes for the (i, j) axes.

    512 keeps the writeback-bound kernel near the HBM roofline while the
    double-buffered f32 output block stays ~4 MiB (safe on v5e/v6e/v7x).
    For L <= target a single full-extent block is used (legal for any L).
    Ragged edges for larger L are handled by the cdiv grid + Pallas masking.
    """
    if L <= target:
        return L, L
    return target, target


def pairwise_contact_head(inputs, weight, bias, *,
                          out_dtype=jnp.float32, channels_last=True):
    """inputs: (B, L, H); weight: (2, 2H) (PyTorch Linear layout); bias: (2,).

    channels_last=True returns the module's (B, L-2, L-2, 2) layout.
    channels_last=False skips the (expensive, layout-hostile) transpose and
    returns (B, 2, L-2, L-2) — preferred for channels-first consumers.
    """
    B, L, H = inputs.shape
    assert weight.shape == (2, 2 * H)

    x = inputs
    # Only the "prod" half of the weight survives symmetrization.
    wp = weight[:, :H].astype(x.dtype)             # (2, H)
    b = bias.astype(jnp.float32)                   # (2,)

    ti, tj = _pick_tiles(L)
    n_i = pl.cdiv(L, ti)
    n_j = pl.cdiv(L, tj)
    # i leads so a megacore split lands on it even when B == 1 (v7x);
    # j is innermost and "arbitrary" (carried row-scratch dependence).
    grid = (n_i, B, n_j)

    in_isz = jnp.dtype(x.dtype).itemsize
    out_isz = jnp.dtype(out_dtype).itemsize
    cost = pl.CostEstimate(
        flops=4 * B * L * L * H,                   # 2 channels × 2·ti·tj·H per tile
        transcendentals=0,
        bytes_accessed=(B * 2 * L * L * out_isz    # dominant: L×L writeback
                        + B * L * H * in_isz * (1 + n_i)))  # rows once, cols per i-block

    out = pl.pallas_call(
        _contact_head_kernel,
        out_shape=jax.ShapeDtypeStruct((B, 2, L, L), out_dtype),
        grid_spec=pltpu.PrefetchScalarGridSpec(
            num_scalar_prefetch=0,
            grid=grid,
            in_specs=[
                pl.BlockSpec((1, ti, H), lambda i, bb, j: (bb, i, 0)),   # rows
                pl.BlockSpec((1, tj, H), lambda i, bb, j: (bb, j, 0)),   # cols
                pl.BlockSpec((2, H), lambda i, bb, j: (0, 0)),           # wp
                pl.BlockSpec(memory_space=pltpu.MemorySpace.SMEM),       # bias
            ],
            out_specs=pl.BlockSpec((1, 2, ti, tj),
                                   lambda i, bb, j: (bb, 0, i, j)),
            scratch_shapes=[pltpu.VMEM((2, ti, H), x.dtype)],
        ),
        compiler_params=pltpu.CompilerParams(
            dimension_semantics=("parallel", "parallel", "arbitrary")),
        cost_estimate=cost,
    )(x, x, wp, b)

    # Slice first (cheap), transpose only if the module's channels-last
    # layout is required (it re-reads/re-writes the full L×L map).
    pred = out[:, :, 1:-1, 1:-1]                   # (B, 2, L-2, L-2)
    if channels_last:
        pred = jnp.transpose(pred, (0, 2, 3, 1))   # (B, L-2, L-2, 2)
    return (pred,)


def _reference(inputs, weight, bias):
    """Pure-JAX mirror of the PyTorch forward (dropout = identity / eval)."""
    prod = inputs[:, :, None, :] * inputs[:, None, :, :]
    diff = inputs[:, :, None, :] - inputs[:, None, :, :]
    feat = jnp.concatenate([prod, diff], axis=-1)          # (B, L, L, 2H)
    pred = feat @ weight.T + bias                          # (B, L, L, 2)
    pred = 0.5 * (pred + jnp.swapaxes(pred, 1, 2))
    return pred[:, 1:-1, 1:-1, :]


def _run_case(key, B, L, H, atol, rtol):
    k_x, k_w, k_b = jax.random.split(key, 3)
    inputs = jax.random.normal(k_x, (B, L, H), dtype=jnp.float32)
    weight = jax.random.normal(k_w, (2, 2 * H), dtype=jnp.float32) * 0.05
    bias = jax.random.normal(k_b, (2,), dtype=jnp.float32) * 0.05

    (pred,) = pairwise_contact_head(inputs, weight, bias)
    pred = jax.block_until_ready(pred)
    ref = _reference(inputs, weight, bias)
    assert pred.shape == (B, L - 2, L - 2, 2), pred.shape
    assert jnp.allclose(pred, ref, atol=atol, rtol=rtol), (
        float(jnp.max(jnp.abs(pred - ref))))
    return pred


if __name__ == "__main__":
    # --- small test (matches the module's natural small shapes) ---
    _run_case(jax.random.PRNGKey(0), B=2, L=8, H=32, atol=1e-4, rtol=1e-4)

    # --- moderate test: single full-extent block path (L <= 512) ---
    _run_case(jax.random.PRNGKey(1), B=1, L=384, H=64, atol=1e-3, rtol=1e-3)

    # --- ragged test: L > 512 exercises the cdiv grid + masked edge blocks ---
    _run_case(jax.random.PRNGKey(2), B=1, L=600, H=32, atol=1e-3, rtol=1e-3)

    # --- channels-first fast path (skips the layout-hostile transpose) ---
    kx, kw, kb = jax.random.split(jax.random.PRNGKey(3), 3)
    x = jax.random.normal(kx, (2, 16, 32), dtype=jnp.float32)
    w = jax.random.normal(kw, (2, 64), dtype=jnp.float32) * 0.05
    bb = jax.random.normal(kb, (2,), dtype=jnp.float32) * 0.05
    (pcf,) = pairwise_contact_head(x, w, bb, channels_last=False)
    pcf = jax.block_until_ready(pcf)
    ref_cf = jnp.transpose(_reference(x, w, bb), (0, 3, 1, 2))
    assert pcf.shape == (2, 2, 14, 14), pcf.shape
    assert jnp.allclose(pcf, ref_cf, atol=1e-4, rtol=1e-4)

    print("KERNEL_OK")
</pallas_src>

<mosaic_0001>
module attributes {stable_mosaic.version = 11 : i64} {
  func.func @_contact_head_kernel(%arg0: i32, %arg1: i32, %arg2: i32, %arg3: memref<1x8x32xf32, #tpu.memory_space<vmem>>, %arg4: memref<1x8x32xf32, #tpu.memory_space<vmem>>, %arg5: memref<2x32xf32, #tpu.memory_space<vmem>>, %arg6: memref<2xf32, #tpu.memory_space<smem>>, %arg7: memref<1x2x8x8xf32, #tpu.memory_space<vmem>>, %arg8: memref<2x8x32xf32, #tpu.memory_space<vmem>>) attributes {dimension_semantics = [#tpu.dimension_semantics<parallel>, #tpu.dimension_semantics<parallel>, #tpu.dimension_semantics<arbitrary>], iteration_bounds = array<i64: 1, 2, 1>, scalar_prefetch = 0 : i64, scratch_operands = 1 : i64, tpu.core_type = #tpu.core_type<tc>, window_params = [{transform_indices = @transform_0, window_bounds = array<i64: 1, 8, 32>}, {transform_indices = @transform_1, window_bounds = array<i64: 1, 8, 32>}, {pipeline_mode = #tpu.pipeline_mode<synchronous>, transform_indices = @transform_2, window_bounds = array<i64: 2, 32>}, {transform_indices = @transform_3, window_bounds = array<i64: 2>}, {transform_indices = @transform_4, window_bounds = array<i64: 1, 2, 8, 8>}]} {
    %c0_i32 = arith.constant 0 : i32
    %0 = arith.cmpi eq, %arg2, %c0_i32 : i32
    %1 = arith.extui %0 : i1 to i32
    %c0_i32_0 = arith.constant 0 : i32
    %2 = arith.cmpi ne, %1, %c0_i32_0 : i32
    scf.if %2 {
      %c0_19 = arith.constant 0 : index
      %c0_20 = arith.constant 0 : index
      %c0_21 = arith.constant 0 : index
      %23 = vector.load %arg3[%c0_19, %c0_20, %c0_21] : memref<1x8x32xf32, #tpu.memory_space<vmem>>, vector<1x8x32xf32>
      %24 = vector.shape_cast %23 : vector<1x8x32xf32> to vector<8x32xf32>
      %c0_22 = arith.constant 0 : index
      %c0_23 = arith.constant 0 : index
      %25 = vector.load %arg5[%c0_22, %c0_23] : memref<2x32xf32, #tpu.memory_space<vmem>>, vector<1x32xf32>
      %26 = vector.broadcast %25 : vector<1x32xf32> to vector<8x32xf32>
      %27 = arith.mulf %24, %26 : vector<8x32xf32>
      %c0_24 = arith.constant 0 : index
      %c0_25 = arith.constant 0 : index
      %c0_26 = arith.constant 0 : index
      %28 = vector.load %arg8[%c0_24, %c0_25, %c0_26] : memref<2x8x32xf32, #tpu.memory_space<vmem>>, vector<1x8x32xf32>
      %29 = vector.shape_cast %28 : vector<1x8x32xf32> to vector<8x32xf32>
      %30 = vector.shape_cast %27 : vector<8x32xf32> to vector<1x8x32xf32>
      tpu.vector_store %arg8[%c0_24, %c0_25, %c0_26], %30 {strides = array<i32>} : memref<2x8x32xf32, #tpu.memory_space<vmem>>, vector<1x8x32xf32>,
      %c1_27 = arith.constant 1 : index
      %c0_28 = arith.constant 0 : index
      %31 = vector.load %arg5[%c1_27, %c0_28] : memref<2x32xf32, #tpu.memory_space<vmem>>, vector<1x32xf32>
      %32 = vector.broadcast %31 : vector<1x32xf32> to vector<8x32xf32>
      %33 = arith.mulf %24, %32 : vector<8x32xf32>
      %c1_29 = arith.constant 1 : index
      %c0_30 = arith.constant 0 : index
      %c0_31 = arith.constant 0 : index
      %34 = vector.load %arg8[%c1_29, %c0_30, %c0_31] : memref<2x8x32xf32, #tpu.memory_space<vmem>>, vector<1x8x32xf32>
      %35 = vector.shape_cast %34 : vector<1x8x32xf32> to vector<8x32xf32>
      %36 = vector.shape_cast %33 : vector<8x32xf32> to vector<1x8x32xf32>
      tpu.vector_store %arg8[%c1_29, %c0_30, %c0_31], %36 {strides = array<i32>} : memref<2x8x32xf32, #tpu.memory_space<vmem>>, vector<1x8x32xf32>,
    } else {
    }
    %c0 = arith.constant 0 : index
    %c0_1 = arith.constant 0 : index
    %c0_2 = arith.constant 0 : index
    %3 = vector.load %arg4[%c0, %c0_1, %c0_2] : memref<1x8x32xf32, #tpu.memory_space<vmem>>, vector<1x8x32xf32>
    %4 = vector.shape_cast %3 : vector<1x8x32xf32> to vector<8x32xf32>
    %c0_3 = arith.constant 0 : index
    %c0_4 = arith.constant 0 : index
    %c0_5 = arith.constant 0 : index
    %5 = vector.load %arg8[%c0_3, %c0_4, %c0_5] : memref<2x8x32xf32, #tpu.memory_space<vmem>>, vector<1x8x32xf32>
    %6 = vector.shape_cast %5 : vector<1x8x32xf32> to vector<8x32xf32>
    %cst = arith.constant dense<0.000000e+00> : vector<8x8xf32>
    %7 = tpu.matmul %6, %4, %cst {dimension_numbers = #tpu.dot_dimension_numbers<[1], [1], [0], [0], [0, 0, 1, 0], [], []>} : vector<8x32xf32>, vector<8x32xf32>, vector<8x8xf32> -> vector<8x8xf32>
    %c0_6 = arith.constant 0 : index
    %8 = memref.load %arg6[%c0_6] : memref<2xf32, #tpu.memory_space<smem>>
    %9 = vector.broadcast %8 : f32 to vector<8x8xf32>
    %10 = arith.addf %7, %9 : vector<8x8xf32>
    %c0_7 = arith.constant 0 : index
    %c0_8 = arith.constant 0 : index
    %c0_9 = arith.constant 0 : index
    %c0_10 = arith.constant 0 : index
    %11 = vector.load %arg7[%c0_7, %c0_8, %c0_9, %c0_10] : memref<1x2x8x8xf32, #tpu.memory_space<vmem>>, vector<1x1x8x8xf32>
    %12 = vector.shape_cast %11 : vector<1x1x8x8xf32> to vector<8x8xf32>
    %13 = vector.shape_cast %10 : vector<8x8xf32> to vector<1x1x8x8xf32>
    tpu.vector_store %arg7[%c0_7, %c0_8, %c0_9, %c0_10], %13 {strides = array<i32>} : memref<1x2x8x8xf32, #tpu.memory_space<vmem>>, vector<1x1x8x8xf32>,
    %c1 = arith.constant 1 : index
    %c0_11 = arith.constant 0 : index
    %c0_12 = arith.constant 0 : index
    %14 = vector.load %arg8[%c1, %c0_11, %c0_12] : memref<2x8x32xf32, #tpu.memory_space<vmem>>, vector<1x8x32xf32>
    %15 = vector.shape_cast %14 : vector<1x8x32xf32> to vector<8x32xf32>
    %cst_13 = arith.constant dense<0.000000e+00> : vector<8x8xf32>
    %16 = tpu.matmul %15, %4, %cst_13 {dimension_numbers = #tpu.dot_dimension_numbers<[1], [1], [0], [0], [0, 0, 1, 0], [], []>} : vector<8x32xf32>, vector<8x32xf32>, vector<8x8xf32> -> vector<8x8xf32>
    %c1_14 = arith.constant 1 : index
    %17 = memref.load %arg6[%c1_14] : memref<2xf32, #tpu.memory_space<smem>>
    %18 = vector.broadcast %17 : f32 to vector<8x8xf32>
    %19 = arith.addf %16, %18 : vector<8x8xf32>
    %c0_15 = arith.constant 0 : index
    %c1_16 = arith.constant 1 : index
    %c0_17 = arith.constant 0 : index
    %c0_18 = arith.constant 0 : index
    %20 = vector.load %arg7[%c0_15, %c1_16, %c0_17, %c0_18] : memref<1x2x8x8xf32, #tpu.memory_space<vmem>>, vector<1x1x8x8xf32>
    %21 = vector.shape_cast %20 : vector<1x1x8x8xf32> to vector<8x8xf32>
    %22 = vector.shape_cast %19 : vector<8x8xf32> to vector<1x1x8x8xf32>
    tpu.vector_store %arg7[%c0_15, %c1_16, %c0_17, %c0_18], %22 {strides = array<i32>} : memref<1x2x8x8xf32, #tpu.memory_space<vmem>>, vector<1x1x8x8xf32>,
    return
  }
  func.func @transform_0(%arg0: i32, %arg1: i32, %arg2: i32) -> (i32, i32, i32) {
    %c0_i32 = arith.constant 0 : i32
    %c0_i32_0 = arith.constant 0 : i32
    return %arg1, %arg0, %c0_i32 : i32, i32, i32
  }
  func.func @transform_1(%arg0: i32, %arg1: i32, %arg2: i32) -> (i32, i32, i32) {
    %c0_i32 = arith.constant 0 : i32
    %c0_i32_0 = arith.constant 0 : i32
    return %arg1, %arg2, %c0_i32 : i32, i32, i32
  }
  func.func @transform_2(%arg0: i32, %arg1: i32, %arg2: i32) -> (i32, i32) {
    %c0_i32 = arith.constant 0 : i32
    %c0_i32_0 = arith.constant 0 : i32
    %c0_i32_1 = arith.constant 0 : i32
    return %c0_i32, %c0_i32_0 : i32, i32
  }
  func.func @transform_3(%arg0: i32, %arg1: i32, %arg2: i32) -> i32 {
    %c0_i32 = arith.constant 0 : i32
    %c0_i32_0 = arith.constant 0 : i32
    return %c0_i32 : i32
  }
  func.func @transform_4(%arg0: i32, %arg1: i32, %arg2: i32) -> (i32, i32, i32, i32) {
    %c0_i32 = arith.constant 0 : i32
    %c0_i32_0 = arith.constant 0 : i32
    return %arg1, %c0_i32, %arg0, %arg2 : i32, i32, i32, i32
  }
}

</mosaic_0001>

<llo_original>
// kernel: tpu_custom_call.1
$region0: #{tpu_custom_call.1}
  #allocation0 [shape = 'u32[]', space=smem, size = 0x4, offset = 0x4, fixed_abs, tag = 'smem constant byte address 0x4 - core index']
  #allocation1 [shape = 'u32[144,128]{1,0:T(1,128)}', space=vmem, size = 0x12000, scoped, tag = 'internal scratch']
  #allocation2 [shape = 'f32[2,8,32]{2,1,0:T(8,128)}', space=vmem, size = 0x2000, scoped, tag = 'scratch operand']
  %s0 = inlined_call_operand.hbm [shape: f32[2,8,32], index: 0, kind: input, shape index: {}]
  %s1 = inlined_call_operand.hbm [shape: f32[2,8,32], index: 1, kind: input, shape index: {}]
  %s2 = inlined_call_operand.vmem [shape: f32[2,32], index: 2, kind: input, shape index: {}]
  %s3 = inlined_call_operand.vmem [shape: f32[2], index: 3, kind: input, shape index: {}]
  %s4 = inlined_call_operand.hbm [shape: f32[2,2,8,8], index: 4, kind: output, shape index: {}]
  %s5 = sld [smem:[#allocation0]]
  $region65: #{tpu_custom_call.1} parent=0
    _
  %s7 = ssub.s32 1, %s5
  %s8 = scalar_select 0, %s7, %s5
  $region1: #{tpu_custom_call.1} parent=0
    #allocation3 [shape = 'u8[8192]{0}', space=vmem, size = 0x2000, scoped, tag = 'input window, operand 0']
    #allocation4 [shape = 's32[2]{0}', space=sflag, size = 0x8, scoped, tag = 'scoped memory for tpu_custom_call.1']
    #allocation5 [shape = 's32[2]{0}', space=sflag, size = 0x8, scoped, tag = 'scoped memory for tpu_custom_call.1']
    #allocation6 [shape = 's32[2]{0}', space=sflag, size = 0x8, scoped, tag = 'scoped memory for tpu_custom_call.1']
    #allocation7 [shape = 'u8[8192]{0}', space=vmem, size = 0x2000, scoped, tag = 'input window, operand 1']
    #allocation8 [shape = 's32[2]{0}', space=sflag, size = 0x8, scoped, tag = 'scoped memory for tpu_custom_call.1']
    #allocation9 [shape = 'u8[512]{0}', space=smem, size = 0x200, scoped, tag = 'input window, operand 3, single buffered']
    #allocation10 [shape = 'u8[16384]{0}', space=vmem, size = 0x4000, scoped, tag = 'output window, operand 0']
    %9 = vsyncpa [#allocation4], 0
    %s10 = scalar_lea.sflag [#allocation4], 1
    %11 = vsyncpa %s10, 0
    %12 = vsyncpa [#allocation8], 0
    %s13 = scalar_lea.sflag [#allocation8], 1
    %14 = vsyncpa %s13, 0
    %15 = vsyncpa [#allocation6], 0
    %16 = vsyncpa [#allocation5], 0
    %s17 = scalar_lea.sflag [#allocation5], 1
    %18 = vsyncpa %s17, 0
    loop: start=0, step=1, limit=4
    $region2: #{tpu_custom_call.1} parent=1 // loop_pre_header
      _
    $region3: #{tpu_custom_call.1} parent=1 // loop_header
      %s20 = sphi 0, %s24
      %p21 = scmp.ge.s32.totalorder %s20, 4
      %s27 = sphi 0, %s46
      %s28 = sphi 0, %s42
      %s29 = sphi 0, %s38
      %s30 = sphi 0, %s27
      %s31 = sphi 0, %s28
      %s32 = sphi 0, %s29
      %s33 = sphi 0, %s30
      %s34 = sphi 0, %s31
      %s35 = sphi 0, %s32
      %s51 = sphi 0, %s53
      %s54 = sphi 0, %s51
      %s55 = sphi 0, %s54
      %s71 = sphi 0, %s55
      %s79 = sphi 0, %s81
      %s82 = sphi 0, %s79
      %s83 = sphi 0, %s82
      %s99 = sphi 0, %s83
      %s103 = sphi 0, %s103
      %s105 = sphi 0, %s103
      %s106 = sphi 0, %s105
      %s120 = sphi 0, %s106
      %s124 = sphi 0, %s124
      %s126 = sphi 0, %s124
      %s127 = sphi 0, %s126
      %s141 = sphi 0, %s127
      %s151 = sphi 0, %s153
      %s154 = sphi 0, %s151
      %s155 = sphi 0, %s154
      %s171 = sphi 0, %s155
    $region4: #{tpu_custom_call.1} parent=1 // loop_header_branch
      %23 = sbr.rel (%p21) target = $region8
    $region5: #{tpu_custom_call.1} parent=1 // loop_body
      %s25 = ssub.s32 %s20, 1
      %s26 = ssub.s32 %s20, 2
      %s36 = sadd.s32 1, %s29
      %p37 = scmp.ge.s32.totalorder %s36, 1
      %s38 = scalar_select %p37, 0, %s36
      %s39 = sadd.s32 1, %s28
      %s40 = scalar_select %p37, %s39, %s28
      %p41 = scmp.ge.s32.totalorder %s40, 2
      %s42 = scalar_select %p41, 0, %s40
      %s43 = sadd.s32 1, %s27
      %s44 = scalar_select %p41, %s43, %s27
      %p45 = scmp.ge.s32.totalorder %s44, 1
      %s46 = scalar_select %p45, 0, %s44
      %s47 = ssub.s32 %s28, %s42
      %s48 = ssub.s32 %s27, %s46
      %s49 = sor.u32 %s47, %s48
      %p50 = scmp.eq.s32.totalorder %s49, 0
      %s52 = sadd.s32 %s51, 1
      %s53 = scalar_select %p50, %s51, %s52
      %p56 = pneg %p50
      %p57 = scmp.eq.s32.totalorder %s20, 1
      %p58 = por %p56, %p57
      %p59 = scmp.ne.s32.totalorder %s51, %s54
      %p60 = scmp.eq.s32.totalorder %s20, 0
      %p61 = por %p59, %p60
      %p62 = scmp.ne.s32.totalorder %s51, %s54
      %p63 = scmp.eq.s32.totalorder %s25, 1
      %p64 = por %p62, %p63
      %p65 = scmp.ne.s32.totalorder %s54, %s55
      %p66 = scmp.eq.s32.totalorder %s25, 0
      %p67 = por %p65, %p66
      %p68 = scmp.ne.s32.totalorder %s54, %s55
      %p69 = scmp.eq.s32.totalorder %s26, 1
      %p70 = por %p68, %p69
      %p72 = scmp.ne.s32.totalorder %s55, %s71
      %p73 = scmp.eq.s32.totalorder %s26, 0
      %p74 = por %p72, %p73
      %s75 = ssub.s32 %s28, %s42
      %s76 = ssub.s32 %s29, %s38
      %s77 = sor.u32 %s75, %s76
      %p78 = scmp.eq.s32.totalorder %s77, 0
      %s80 = sadd.s32 %s79, 1
      %s81 = scalar_select %p78, %s79, %s80
      %p84 = pneg %p78
      %p85 = scmp.eq.s32.totalorder %s20, 1
      %p86 = por %p84, %p85
      %p87 = scmp.ne.s32.totalorder %s79, %s82
      %p88 = scmp.eq.s32.totalorder %s20, 0
      %p89 = por %p87, %p88
      %p90 = scmp.ne.s32.totalorder %s79, %s82
      %p91 = scmp.eq.s32.totalorder %s25, 1
      %p92 = por %p90, %p91
      %p93 = scmp.ne.s32.totalorder %s82, %s83
      %p94 = scmp.eq.s32.totalorder %s25, 0
      %p95 = por %p93, %p94
      %p96 = scmp.ne.s32.totalorder %s82, %s83
      %p97 = scmp.eq.s32.totalorder %s26, 1
      %p98 = por %p96, %p97
      %p100 = scmp.ne.s32.totalorder %s83, %s99
      %p101 = scmp.eq.s32.totalorder %s26, 0
      %p102 = por %p100, %p101
      %s104 = sadd.s32 %s103, 1
      %p107 = scmp.eq.s32.totalorder %s20, 1
      %p108 = scmp.ne.s32.totalorder %s103, %s105
      %p109 = scmp.eq.s32.totalorder %s20, 0
      %p110 = por %p108, %p109
      %p111 = scmp.ne.s32.totalorder %s103, %s105
      %p112 = scmp.eq.s32.totalorder %s25, 1
      %p113 = por %p111, %p112
      %p114 = scmp.ne.s32.totalorder %s105, %s106
      %p115 = scmp.eq.s32.totalorder %s25, 0
      %p116 = por %p114, %p115
      %p117 = scmp.ne.s32.totalorder %s105, %s106
      %p118 = scmp.eq.s32.totalorder %s26, 1
      %p119 = por %p117, %p118
      %p121 = scmp.ne.s32.totalorder %s106, %s120
      %p122 = scmp.eq.s32.totalorder %s26, 0
      %p123 = por %p121, %p122
      %s125 = sadd.s32 %s124, 1
      %p128 = scmp.eq.s32.totalorder %s20, 1
      %p129 = scmp.ne.s32.totalorder %s124, %s126
      %p130 = scmp.eq.s32.totalorder %s20, 0
      %p131 = por %p129, %p130
      %p132 = scmp.ne.s32.totalorder %s124, %s126
      %p133 = scmp.eq.s32.totalorder %s25, 1
      %p134 = por %p132, %p133
      %p135 = scmp.ne.s32.totalorder %s126, %s127
      %p136 = scmp.eq.s32.totalorder %s25, 0
      %p137 = por %p135, %p136
      %p138 = scmp.ne.s32.totalorder %s126, %s127
      %p139 = scmp.eq.s32.totalorder %s26, 1
      %p140 = por %p138, %p139
      %p142 = scmp.ne.s32.totalorder %s127, %s141
      %p143 = scmp.eq.s32.totalorder %s26, 0
      %p144 = por %p142, %p143
      %s145 = ssub.s32 %s28, %s42
      %s146 = ssub.s32 %s27, %s46
      %s147 = sor.u32 %s145, %s146
      %s148 = ssub.s32 %s29, %s38
      %s149 = sor.u32 %s147, %s148
      %p150 = scmp.eq.s32.totalorder %s149, 0
      %s152 = sadd.s32 %s151, 1
      %s153 = scalar_select %p150, %s151, %s152
      %p156 = pneg %p150
      %p157 = scmp.eq.s32.totalorder %s20, 1
      %p158 = por %p156, %p157
      %p159 = scmp.ne.s32.totalorder %s151, %s154
      %p160 = scmp.eq.s32.totalorder %s20, 0
      %p161 = por %p159, %p160
      %p162 = scmp.ne.s32.totalorder %s151, %s154
      %p163 = scmp.eq.s32.totalorder %s25, 1
      %p164 = por %p162, %p163
      %p165 = scmp.ne.s32.totalorder %s154, %s155
      %p166 = scmp.eq.s32.totalorder %s25, 0
      %p167 = por %p165, %p166
      %p168 = scmp.ne.s32.totalorder %s154, %s155
      %p169 = scmp.eq.s32.totalorder %s26, 1
      %p170 = por %p168, %p169
      %p172 = scmp.ne.s32.totalorder %s155, %s171
      %p173 = scmp.eq.s32.totalorder %s26, 0
      %p174 = por %p172, %p173
      %p175 = scmp.le.s32.totalorder 1, %s20
      %p176 = scmp.lt.s32.totalorder %s20, 3
      %p177 = pnand %p175, %p176
      %p178 = pneg %p177
      // Predicated region
      $region9: #{tpu_custom_call.1} parent=5 // pred_check
        _
      $region10: #{tpu_custom_call.1} parent=5 // pred_check_branch
        %180 = sbr.rel (%p177) target = $region12
      $region11: #{tpu_custom_call.1} parent=5 // pred_region
        %s181 = ssub.s32 %s20, 1
        // Predicated region
        $region13: #{tpu_custom_call.1} parent=11 // pred_check
          %p182 = pneg %p116
        $region14: #{tpu_custom_call.1} parent=11 // pred_check_branch
          %184 = sbr.rel (%p182) target = $region16
        $region15: #{tpu_custom_call.1} parent=11 // pred_region
          _
        $region16: #{tpu_custom_call.1} parent=11 // pred_fallthru
          _
        // Predicated region
        $region17: #{tpu_custom_call.1} parent=11 // pred_check
          %p185 = pneg %p137
        $region18: #{tpu_custom_call.1} parent=11 // pred_check_branch
          %187 = sbr.rel (%p185) target = $region20
        $region19: #{tpu_custom_call.1} parent=11 // pred_region
          %s189 = ssub.s32 16, 16
          %190 = vsyncadd [#allocation6], %s189
          %s192 = sshll.u32 %s3, 4
          %s193 = int_to_ptr.vmem [resolvable:$true] %s192
          %195 = dma.vmem_to_smem %s193, 16, [#allocation9], [#allocation6]
        $region20: #{tpu_custom_call.1} parent=11 // pred_fallthru
          _
      $region12: #{tpu_custom_call.1} parent=5 // pred_fallthru
        _
      %p196 = scmp.lt.s32.totalorder %s20, 2
      // Predicated region
      $region21: #{tpu_custom_call.1} parent=5 // pred_check
        %p197 = pneg %p196
      $region22: #{tpu_custom_call.1} parent=5 // pred_check_branch
        %199 = sbr.rel (%p197) target = $region24
      $region23: #{tpu_custom_call.1} parent=5 // pred_region
        // Predicated region
        $region25: #{tpu_custom_call.1} parent=23 // pred_check
          %p200 = pneg %p61
        $region26: #{tpu_custom_call.1} parent=23 // pred_check_branch
          %202 = sbr.rel (%p200) target = $region28
        $region27: #{tpu_custom_call.1} parent=23 // pred_region
          %s203 = sand.u32 %s51, 1
          %s204 = scalar_lea.sflag [#allocation4], %s203
          %s205 = sand.u32 %s51, 1
          %s206 = smul.addr %s205, 8
          %s207 = scalar_lea.vmem [#allocation3], %s206
          %s209 = ssub.s32 128, 128
          %210 = vsyncadd %s204, %s209
          %s211 = sadd.s32 %s27, %s28
          %s212 = smul.addr %s211, 128
          %s213 = scalar_lea.hbm %s0, %s212
          %s215 = sshll.u32 %s207, 4
          %s216 = int_to_ptr.vmem [resolvable:$true] %s215
          %218 = dma.hbm_to_vmem [thread:$0]  %s213, 128, %s216, %s204
        $region28: #{tpu_custom_call.1} parent=23 // pred_fallthru
          _
        // Predicated region
        $region29: #{tpu_custom_call.1} parent=23 // pred_check
          %p219 = pneg %p89
        $region30: #{tpu_custom_call.1} parent=23 // pred_check_branch
          %221 = sbr.rel (%p219) target = $region32
        $region31: #{tpu_custom_call.1} parent=23 // pred_region
          %s222 = sand.u32 %s79, 1
          %s223 = scalar_lea.sflag [#allocation8], %s222
          %s224 = sand.u32 %s79, 1
          %s225 = smul.addr %s224, 8
          %s226 = scalar_lea.vmem [#allocation7], %s225
          %s228 = ssub.s32 128, 128
          %229 = vsyncadd %s223, %s228
          %s230 = sadd.s32 %s29, %s28
          %s231 = smul.addr %s230, 128
          %s232 = scalar_lea.hbm %s1, %s231
          %s234 = sshll.u32 %s226, 4
          %s235 = int_to_ptr.vmem [resolvable:$true] %s234
          %237 = dma.hbm_to_vmem [thread:$0]  %s232, 128, %s235, %s223
        $region32: #{tpu_custom_call.1} parent=23 // pred_fallthru
          _
      $region24: #{tpu_custom_call.1} parent=5 // pred_fallthru
        _
      %p238 = scmp.le.s32.totalorder 1, %s20
      %p239 = scmp.lt.s32.totalorder %s20, 3
      %p240 = pnand %p238, %p239
      %p241 = pneg %p240
      // Predicated region
      $region33: #{tpu_custom_call.1} parent=5 // pred_check
        _
      $region34: #{tpu_custom_call.1} parent=5 // pred_check_branch
        %243 = sbr.rel (%p240) target = $region36
      $region35: #{tpu_custom_call.1} parent=5 // pred_region
        %s244 = ssub.s32 %s20, 1
        %s245 = sand.u32 %s54, 1
        %s246 = scalar_lea.sflag [#allocation4], %s245
        %s247 = sand.u32 %s54, 1
        %s248 = smul.addr %s247, 8
        %s249 = scalar_lea.vmem [#allocation3], %s248
        // Predicated region
        $region37: #{tpu_custom_call.1} parent=35 // pred_check
          %p250 = pneg %p67
        $region38: #{tpu_custom_call.1} parent=35 // pred_check_branch
          %252 = sbr.rel (%p250) target = $region40
        $region39: #{tpu_custom_call.1} parent=35 // pred_region
          %253 = dma.done %s246, 128
        $region40: #{tpu_custom_call.1} parent=35 // pred_fallthru
          _
        %s254 = sand.u32 %s82, 1
        %s255 = scalar_lea.sflag [#allocation8], %s254
        %s256 = sand.u32 %s82, 1
        %s257 = smul.addr %s256, 8
        %s258 = scalar_lea.vmem [#allocation7], %s257
        // Predicated region
        $region41: #{tpu_custom_call.1} parent=35 // pred_check
          %p259 = pneg %p95
        $region42: #{tpu_custom_call.1} parent=35 // pred_check_branch
          %261 = sbr.rel (%p259) target = $region44
        $region43: #{tpu_custom_call.1} parent=35 // pred_region
          %262 = dma.done %s255, 128
        $region44: #{tpu_custom_call.1} parent=35 // pred_fallthru
          _
        // Predicated region
        $region45: #{tpu_custom_call.1} parent=35 // pred_check
          %p263 = pneg %p137
        $region46: #{tpu_custom_call.1} parent=35 // pred_check_branch
          %265 = sbr.rel (%p263) target = $region48
        $region47: #{tpu_custom_call.1} parent=35 // pred_region
          %266 = dma.done [#allocation6], 16
        $region48: #{tpu_custom_call.1} parent=35 // pred_fallthru
          _
        %267 = sfence
        %s268 = sand.u32 %s54, 1
        %s269 = scalar_lea.sflag [#allocation4], %s268
        %s270 = sand.u32 %s54, 1
        %s271 = smul.addr %s270, 8
        %s272 = scalar_lea.vmem [#allocation3], %s271
        %p273 = pneg %p67
        %p274 = pneg %p64
        %s275 = sand.u32 %s82, 1
        %s276 = scalar_lea.sflag [#allocation8], %s275
        %s277 = sand.u32 %s82, 1
        %s278 = smul.addr %s277, 8
        %s279 = scalar_lea.vmem [#allocation7], %s278
        %p280 = pneg %p95
        %p281 = pneg %p92
        %p282 = pneg %p116
        %p283 = pneg %p113
        %p284 = pneg %p137
        %p285 = pneg %p134
        %p286 = pneg %p167
        %p287 = pneg %p164
        %s288 = sand.u32 %s154, 1
        %s289 = scalar_lea.sflag [#allocation5], %s288
        %s290 = sand.u32 %s154, 1
        %s291 = smul.addr %s290, 16
        %s292 = scalar_lea.vmem [#allocation10], %s291
        %p293 = scmp.eq.s32.totalorder %s32, 0
        // Predicated region
        $region49: #{tpu_custom_call.1} parent=35 // pred_check
          %p294 = pneg %p293
        $region50: #{tpu_custom_call.1} parent=35 // pred_check_branch
          %296 = sbr.rel (%p294) target = $region52
        $region51: #{tpu_custom_call.1} parent=35 // pred_region
          %v297 = vld [vmem:[%s249] sm:$0xff]
          %v298 = vld [vmem:[%s2] sm:$0x1]
          %v299 = vlaneseq
          %v300 = vshrl.u32 %v299, 7
          %v301 = vsub.s32 0, %v300
          %v302 = vrot.slane %v298, %v301
          %v303 = vmul.f32 %v297, %v302
          %vm304 = vcmask 261120
          %305 = vst.msk [vmem:[#allocation2] sm:$0xff] %vm304, %v303
          %v306 = vld [vmem:[%s2 + $0x1] sm:$0x1]
          %v307 = vlaneseq
          %v308 = vshrl.u32 %v307, 7
          %v309 = vsub.s32 0, %v308
          %v310 = vrot.slane %v306, %v309
          %v311 = vmul.f32 %v297, %v310
          %s312 = scalar_lea.vmem [#allocation2], 8
          %313 = vst.msk [vmem:[%s312] sm:$0xff] %vm304, %v311
        $region52: #{tpu_custom_call.1} parent=35 // pred_fallthru
          _
        %v314 = vld [vmem:[%s258] sm:$0xff]
        %v315 = vld [vmem:[#allocation2] sm:$0xff]
        %s316 = sld [smem:[#allocation9]]
        %v317 = vstv %s316
        %vm318 = vcmask 261120
        %v320 = vsel %vm318, %v315, 0
        %v323 = vsel %vm318, %v314, 0
        %325 = vmatprep.subr.mxu0 0.0
        %326 = vmatpush1.xpose.msra.mxu0 0.0
        %327 = vmatprep.subr.mxu0 0.0
        %328 = vmatpush1.xpose.msra.mxu0 0.0
        %329 = vmatprep.subr.mxu0 0.0
        %330 = vmatpush1.xpose.msra.mxu0 0.0
        %331 = vmatprep.subr.mxu0 0.0
        %332 = vmatpush1.xpose.msra.mxu0 0.0
        %333 = vmatprep.subr.mxu0 0.0
        %334 = vmatpush1.xpose.msra.mxu0 0.0
        %335 = vmatprep.subr.mxu0 0.0
        %336 = vmatpush1.xpose.msra.mxu0 0.0
        %337 = vmatprep.subr.mxu0 0.0
        %338 = vmatpush1.xpose.msra.mxu0 0.0
        %339 = vmatprep.subr.mxu0 0.0
        %340 = vmatpush1.xpose.msra.mxu0 0.0
        %341 = vmatprep.subr.mxu0 0.0
        %342 = vmatpush1.xpose.msra.mxu0 0.0
        %343 = vmatprep.subr.mxu0 0.0
        %344 = vmatpush1.xpose.msra.mxu0 0.0
        %345 = vmatprep.subr.mxu0 0.0
        %346 = vmatpush1.xpose.msra.mxu0 0.0
        %347 = vmatprep.subr.mxu0 0.0
        %348 = vmatpush1.xpose.msra.mxu0 0.0
        %349 = vmatprep.subr.mxu0 0.0
        %350 = vmatpush1.xpose.msra.mxu0 0.0
        %351 = vmatprep.subr.mxu0 0.0
        %352 = vmatpush1.xpose.msra.mxu0 0.0
        %353 = vmatprep.subr.mxu0 0.0
        %354 = vmatpush1.xpose.msra.mxu0 0.0
        %355 = vmatprep.subr.mxu0 0.0
        %356 = vmatpush1.xpose.msra.mxu0 %v323
        %357 = vmatprep.subr.mxu0 0.0
        %358 = vmatpush2.xpose.msra.mxu0 0.0
        %359 = vmatprep.subr.mxu0 0.0
        %360 = vmatpush2.xpose.msra.mxu0 0.0
        %361 = vmatprep.subr.mxu0 0.0
        %362 = vmatpush2.xpose.msra.mxu0 0.0
        %363 = vmatprep.subr.mxu0 0.0
        %364 = vmatpush2.xpose.msra.mxu0 0.0
        %365 = vmatprep.subr.mxu0 0.0
        %366 = vmatpush2.xpose.msra.mxu0 0.0
        %367 = vmatprep.subr.mxu0 0.0
        %368 = vmatpush2.xpose.msra.mxu0 0.0
        %369 = vmatprep.subr.mxu0 0.0
        %370 = vmatpush2.xpose.msra.mxu0 0.0
        %371 = vmatprep.subr.mxu0 0.0
        %372 = vmatpush2.xpose.msra.mxu0 0.0
        %373 = vmatprep.subr.mxu0 0.0
        %374 = vmatpush2.xpose.msra.mxu0 0.0
        %375 = vmatprep.subr.mxu0 0.0
        %376 = vmatpush2.xpose.msra.mxu0 0.0
        %377 = vmatprep.subr.mxu0 0.0
        %378 = vmatpush2.xpose.msra.mxu0 0.0
        %379 = vmatprep.subr.mxu0 0.0
        %380 = vmatpush2.xpose.msra.mxu0 0.0
        %381 = vmatprep.subr.mxu0 0.0
        %382 = vmatpush2.xpose.msra.mxu0 0.0
        %383 = vmatprep.subr.mxu0 0.0
        %384 = vmatpush2.xpose.msra.mxu0 0.0
        %385 = vmatprep.subr.mxu0 0.0
        %386 = vmatpush2.xpose.msra.mxu0 0.0
        %387 = vmatprep.subr.mxu0 0.0
        %388 = vmatpush2.xpose.msra.mxu0 0.0
        %389 = vmatprep.mubr.f32.mxu0 0.0
        %390 = vmatmul.mubr.f32.gmra.mxu0 %v320
        %v391 = vpop.f32.mrf.mxu0
        %v392 = vadd.f32 %v317, %v391
        %v393 = vpop.f32.mrf.mxu0
        %394 = vdwg.mxu0
        %vm395 = vcmask 64512
        %396 = vst.msk [vmem:[%s292] sm:$0xff] %vm395, %v392
        %s397 = scalar_lea.vmem [#allocation2], 8
        %v398 = vld [vmem:[%s397] sm:$0xff]
        %s399 = sld [smem:[#allocation9 + $0x1]]
        %v400 = vstv %s399
        %v402 = vsel %vm318, %v398, 0
        %404 = vmatprep.subr.mxu0 0.0
        %405 = vmatpush1.xpose.msra.mxu0 0.0
        %406 = vmatprep.subr.mxu0 0.0
        %407 = vmatpush1.xpose.msra.mxu0 0.0
        %408 = vmatprep.subr.mxu0 0.0
        %409 = vmatpush1.xpose.msra.mxu0 0.0
        %410 = vmatprep.subr.mxu0 0.0
        %411 = vmatpush1.xpose.msra.mxu0 0.0
        %412 = vmatprep.subr.mxu0 0.0
        %413 = vmatpush1.xpose.msra.mxu0 0.0
        %414 = vmatprep.subr.mxu0 0.0
        %415 = vmatpush1.xpose.msra.mxu0 0.0
        %416 = vmatprep.subr.mxu0 0.0
        %417 = vmatpush1.xpose.msra.mxu0 0.0
        %418 = vmatprep.subr.mxu0 0.0
        %419 = vmatpush1.xpose.msra.mxu0 0.0
        %420 = vmatprep.subr.mxu0 0.0
        %421 = vmatpush1.xpose.msra.mxu0 0.0
        %422 = vmatprep.subr.mxu0 0.0
        %423 = vmatpush1.xpose.msra.mxu0 0.0
        %424 = vmatprep.subr.mxu0 0.0
        %425 = vmatpush1.xpose.msra.mxu0 0.0
        %426 = vmatprep.subr.mxu0 0.0
        %427 = vmatpush1.xpose.msra.mxu0 0.0
        %428 = vmatprep.subr.mxu0 0.0
        %429 = vmatpush1.xpose.msra.mxu0 0.0
        %430 = vmatprep.subr.mxu0 0.0
        %431 = vmatpush1.xpose.msra.mxu0 0.0
        %432 = vmatprep.subr.mxu0 0.0
        %433 = vmatpush1.xpose.msra.mxu0 0.0
        %434 = vmatprep.subr.mxu0 0.0
        %435 = vmatpush1.xpose.msra.mxu0 %v323
        %436 = vmatprep.subr.mxu0 0.0
        %437 = vmatpush2.xpose.msra.mxu0 0.0
        %438 = vmatprep.subr.mxu0 0.0
        %439 = vmatpush2.xpose.msra.mxu0 0.0
        %440 = vmatprep.subr.mxu0 0.0
        %441 = vmatpush2.xpose.msra.mxu0 0.0
        %442 = vmatprep.subr.mxu0 0.0
        %443 = vmatpush2.xpose.msra.mxu0 0.0
        %444 = vmatprep.subr.mxu0 0.0
        %445 = vmatpush2.xpose.msra.mxu0 0.0
        %446 = vmatprep.subr.mxu0 0.0
        %447 = vmatpush2.xpose.msra.mxu0 0.0
        %448 = vmatprep.subr.mxu0 0.0
        %449 = vmatpush2.xpose.msra.mxu0 0.0
        %450 = vmatprep.subr.mxu0 0.0
        %451 = vmatpush2.xpose.msra.mxu0 0.0
        %452 = vmatprep.subr.mxu0 0.0
        %453 = vmatpush2.xpose.msra.mxu0 0.0
        %454 = vmatprep.subr.mxu0 0.0
        %455 = vmatpush2.xpose.msra.mxu0 0.0
        %456 = vmatprep.subr.mxu0 0.0
        %457 = vmatpush2.xpose.msra.mxu0 0.0
        %458 = vmatprep.subr.mxu0 0.0
        %459 = vmatpush2.xpose.msra.mxu0 0.0
        %460 = vmatprep.subr.mxu0 0.0
        %461 = vmatpush2.xpose.msra.mxu0 0.0
        %462 = vmatprep.subr.mxu0 0.0
        %463 = vmatpush2.xpose.msra.mxu0 0.0
        %464 = vmatprep.subr.mxu0 0.0
        %465 = vmatpush2.xpose.msra.mxu0 0.0
        %466 = vmatprep.subr.mxu0 0.0
        %467 = vmatpush2.xpose.msra.mxu0 0.0
        %468 = vmatprep.mubr.f32.mxu0 0.0
        %469 = vmatmul.mubr.f32.gmra.mxu0 %v402
        %v470 = vpop.f32.mrf.mxu0
        %v471 = vadd.f32 %v400, %v470
        %v472 = vpop.f32.mrf.mxu0
        %473 = vdwg.mxu0
        %s474 = scalar_lea.vmem %s292, 8 [#allocation10]
        %475 = vst.msk [vmem:[%s474] sm:$0xff] %vm395, %v471
        %s476 = sand.u32 %s154, 1
        %s477 = scalar_lea.sflag [#allocation5], %s476
        %s478 = sand.u32 %s154, 1
        %s479 = smul.addr %s478, 16
        %s480 = scalar_lea.vmem [#allocation10], %s479
        // Predicated region
        $region53: #{tpu_custom_call.1} parent=35 // pred_check
          %p481 = pneg %p164
        $region54: #{tpu_custom_call.1} parent=35 // pred_check_branch
          %483 = sbr.rel (%p481) target = $region56
        $region55: #{tpu_custom_call.1} parent=35 // pred_region
          %s485 = ssub.s32 256, 256
          %486 = vsyncadd %s477, %s485
          %s487 = sadd.s32 %s32, %s30
          %s488 = smul.addr %s31, 2
          %s489 = sadd.s32 %s487, %s488
          %s490 = smul.addr %s489, 128
          %s491 = scalar_lea.hbm %s4, %s490
          %s492 = sshll.u32 %s480, 4
          %s493 = int_to_ptr.vmem [resolvable:$true] %s492
          %498 = dma.vmem_to_hbm [thread:$0]  %s493, 256, %s491, %s477, 128, 128, 8
        $region56: #{tpu_custom_call.1} parent=35 // pred_fallthru
          _
      $region36: #{tpu_custom_call.1} parent=5 // pred_fallthru
        _
      %p499 = scmp.le.s32.totalorder 2, %s20
      // Predicated region
      $region57: #{tpu_custom_call.1} parent=5 // pred_check
        %p500 = pneg %p499
      $region58: #{tpu_custom_call.1} parent=5 // pred_check_branch
        %502 = sbr.rel (%p500) target = $region60
      $region59: #{tpu_custom_call.1} parent=5 // pred_region
        %s503 = ssub.s32 %s20, 2
        // Predicated region
        $region61: #{tpu_custom_call.1} parent=59 // pred_check
          %p504 = pneg %p170
        $region62: #{tpu_custom_call.1} parent=59 // pred_check_branch
          %506 = sbr.rel (%p504) target = $region64
        $region63: #{tpu_custom_call.1} parent=59 // pred_region
          %s507 = sand.u32 %s155, 1
          %s508 = scalar_lea.sflag [#allocation5], %s507
          %s509 = sand.u32 %s155, 1
          %s510 = smul.addr %s509, 16
          %s511 = scalar_lea.vmem [#allocation10], %s510
          %512 = dma.done %s508, 256
        $region64: #{tpu_custom_call.1} parent=59 // pred_fallthru
          _
      $region60: #{tpu_custom_call.1} parent=5 // pred_fallthru
        _
    $region6: #{tpu_custom_call.1} parent=1 // loop_footer
      %s24 = sadd.s32 1, %s20
    $region7: #{tpu_custom_call.1} parent=1 // loop_footer_branch
      %19 = sbr.rel target = $region3
    $region8: #{tpu_custom_call.1} parent=1 // loop_exit
      _
    %513 = vsyncpa [#allocation4], 1
    %s514 = scalar_lea.sflag [#allocation4], 1
    %515 = vsyncpa %s514, 1
    %516 = vsyncpa [#allocation8], 1
    %s517 = scalar_lea.sflag [#allocation8], 1
    %518 = vsyncpa %s517, 1
    %519 = vsyncpa [#allocation5], 1
    %s520 = scalar_lea.sflag [#allocation5], 1
    %521 = vsyncpa %s520, 1
    %522 = vsyncpa [#allocation6], 1
    %s523 = scalar_lea.sflag [#allocation6], 1
    %524 = vsyncpa %s523, 1

</llo_original>
